<compile_context>
chip_gen: v6e
topology: v6e:2x2x1
jax: 0.10.0
libtpu: 0.0.40
codegen_flags: <defaults>
</compile_context>

<pallas_src>
import functools
import math

import jax
import jax.numpy as jnp
from jax import lax
from jax.experimental import pallas as pl
from jax.experimental.pallas import tpu as pltpu


def _round_up(a: int, b: int) -> int:
    return (a + b - 1) // b * b


_MAX_OUTSTANDING = 8  # outstanding per-row DMAs per grid step


def _embed_gather_kernel(ids_ref, tab_hbm, o_ref, sem, *, scale, tile_tokens, nwin):
    # ids_ref : SMEM (n_tok_pad,) int32   all token ids (scalar-prefetched)
    # tab_hbm : HBM  (vocab, d_model)     embedding table, left in place
    # o_ref   : VMEM (tile_tokens, d_model) output block for this token tile
    # sem     : DMA semaphores, shape (nwin,) -- one per outstanding-copy slot
    i = pl.program_id(0)
    base = i * tile_tokens

    def row_copy(r, slot):
        tok = ids_ref[base + r]
        return pltpu.make_async_copy(
            tab_hbm.at[pl.ds(tok, 1), :],   # one embedding row in HBM
            o_ref.at[pl.ds(r, 1), :],       # matching row of the output block
            sem.at[slot],
        )

    # Prime the pipeline: issue the first `nwin` row copies (nwin <= 8, unrolled).
    for r in range(nwin):
        row_copy(r, r).start()

    # Steady state: wait for row r, then reuse its slot for row r + nwin.
    def steady(r, carry):
        slot = lax.rem(r, nwin)
        row_copy(r, slot).wait()

        @pl.when(r + nwin < tile_tokens)
        def _issue_next():
            row_copy(r + nwin, slot).start()

        return carry

    lax.fori_loop(0, tile_tokens, steady, 0)

    # All rows are resident in the output block; apply sqrt(d_model) on the VPU.
    o_ref[...] = (o_ref[...] * scale).astype(o_ref.dtype)


def input_embedding(token_ids, emb_table, *, tile_tokens=256):
    """token_ids: int array (...,); emb_table: (vocab_size, d_model).

    Returns emb_table[token_ids] * sqrt(d_model) with shape (..., d_model).
    """
    vocab_size, d_model = emb_table.shape
    scale = math.sqrt(d_model)

    orig_shape = token_ids.shape
    ids = token_ids.reshape(-1).astype(jnp.int32)
    n_tok = ids.shape[0]

    # Token tile: multiple of 8 (sublane packing), no larger than padded token count.
    n_tok8 = _round_up(max(n_tok, 1), 8)
    tile_tokens = min(_round_up(tile_tokens, 8), n_tok8)
    # Prefer >= 2 token tiles so the "parallel" axis can split across v7x's 2 cores.
    if n_tok8 // tile_tokens < 2 and n_tok8 >= 16:
        tile_tokens = max(8, _round_up(n_tok8 // 2, 8))
    n_tok_pad = _round_up(n_tok8, tile_tokens)
    n_tiles = n_tok_pad // tile_tokens
    nwin = min(_MAX_OUTSTANDING, tile_tokens)

    # Padded token slots gather row 0 of the table; they are sliced off below.
    ids_p = jnp.pad(ids, (0, n_tok_pad - n_tok))

    kernel = functools.partial(
        _embed_gather_kernel, scale=scale, tile_tokens=tile_tokens, nwin=nwin
    )

    out = pl.pallas_call(
        kernel,
        out_shape=jax.ShapeDtypeStruct((n_tok_pad, d_model), emb_table.dtype),
        grid_spec=pltpu.PrefetchScalarGridSpec(
            num_scalar_prefetch=1,                        # ids -> SMEM
            grid=(n_tiles,),
            in_specs=[pl.BlockSpec(memory_space=pl.ANY)], # table stays in HBM
            out_specs=pl.BlockSpec((tile_tokens, d_model), lambda i, ids: (i, 0)),
            scratch_shapes=[pltpu.SemaphoreType.DMA((nwin,))],
        ),
        compiler_params=pltpu.CompilerParams(
            dimension_semantics=("parallel",),
        ),
    )(ids_p, emb_table)

    out = out[:n_tok]
    return out.reshape(*orig_shape, d_model)


if __name__ == "__main__":
    key = jax.random.PRNGKey(0)
    k_ids, k_emb = jax.random.split(key)

    batch, seq, d_model, vocab_size = 2, 8, 32, 64
    token_ids = jax.random.randint(
        k_ids, (batch, seq), 0, vocab_size, dtype=jnp.int32
    )
    emb_table = jax.random.normal(k_emb, (vocab_size, d_model), dtype=jnp.float32)

    out = input_embedding(token_ids, emb_table)
    out = jax.block_until_ready(out)

    # Pure-JAX reference: embedding lookup scaled by sqrt(d_model).
    ref = jnp.take(emb_table, token_ids, axis=0) * math.sqrt(d_model)
    assert out.shape == (batch, seq, d_model), out.shape
    assert jnp.allclose(out, ref, atol=1e-6, rtol=1e-6), "mismatch vs reference"

    print("KERNEL_OK")
</pallas_src>

<mosaic_0001>
module attributes {stable_mosaic.version = 11 : i64} {
  func.func @_embed_gather_kernel(%arg0: i32, %arg1: memref<16xi32, #tpu.memory_space<smem>>, %arg2: memref<64x32xf32, #tpu.memory_space<any>>, %arg3: memref<8x32xf32, #tpu.memory_space<vmem>>, %arg4: memref<8x!tpu.dma_semaphore, #tpu.memory_space<semaphore_mem>>) attributes {dimension_semantics = [#tpu.dimension_semantics<parallel>], iteration_bounds = array<i64: 2>, scalar_prefetch = 1 : i64, scratch_operands = 1 : i64, tpu.core_type = #tpu.core_type<tc>, window_params = [{}, {transform_indices = @transform_1, window_bounds = array<i64: 8, 32>}]} {
    %c8_i32 = arith.constant 8 : i32
    %0 = arith.muli %arg0, %c8_i32 : i32
    %c0_i32 = arith.constant 0 : i32
    %1 = arith.addi %0, %c0_i32 : i32
    %2 = arith.index_cast %1 : i32 to index
    %3 = memref.load %arg1[%2] : memref<16xi32, #tpu.memory_space<smem>>
    %c0_i32_0 = arith.constant 0 : i32
    %c0_i32_1 = arith.constant 0 : i32
    %4 = tpu.memref_slice %arg2[%3, %c0_i32_1] : memref<64x32xf32, #tpu.memory_space<any>> -> memref<1x32xf32, #tpu.memory_space<any>>
    %c0_i32_2 = arith.constant 0 : i32
    %c0_i32_3 = arith.constant 0 : i32
    %5 = tpu.memref_slice %arg3[%c0_i32_2, %c0_i32_3] : memref<8x32xf32, #tpu.memory_space<vmem>> -> memref<1x32xf32, #tpu.memory_space<vmem>>
    %6 = tpu.memref_slice %arg4[%c0_i32_0] : memref<8x!tpu.dma_semaphore, #tpu.memory_space<semaphore_mem>> -> memref<1x!tpu.dma_semaphore, #tpu.memory_space<semaphore_mem>>
    %7 = tpu.memref_squeeze %6 : memref<1x!tpu.dma_semaphore, #tpu.memory_space<semaphore_mem>> -> memref<!tpu.dma_semaphore, #tpu.memory_space<semaphore_mem>>
    tpu.enqueue_dma source(%4 : memref<1x32xf32, #tpu.memory_space<any>>) target(%5 : memref<1x32xf32, #tpu.memory_space<vmem>>) target_semaphore(%7 : memref<!tpu.dma_semaphore, #tpu.memory_space<semaphore_mem>>)
    %c1_i32 = arith.constant 1 : i32
    %8 = arith.addi %0, %c1_i32 : i32
    %9 = arith.index_cast %8 : i32 to index
    %10 = memref.load %arg1[%9] : memref<16xi32, #tpu.memory_space<smem>>
    %c1_i32_4 = arith.constant 1 : i32
    %c0_i32_5 = arith.constant 0 : i32
    %11 = tpu.memref_slice %arg2[%10, %c0_i32_5] : memref<64x32xf32, #tpu.memory_space<any>> -> memref<1x32xf32, #tpu.memory_space<any>>
    %c1_i32_6 = arith.constant 1 : i32
    %c0_i32_7 = arith.constant 0 : i32
    %12 = tpu.memref_slice %arg3[%c1_i32_6, %c0_i32_7] : memref<8x32xf32, #tpu.memory_space<vmem>> -> memref<1x32xf32, #tpu.memory_space<vmem>>
    %13 = tpu.memref_slice %arg4[%c1_i32_4] : memref<8x!tpu.dma_semaphore, #tpu.memory_space<semaphore_mem>> -> memref<1x!tpu.dma_semaphore, #tpu.memory_space<semaphore_mem>>
    %14 = tpu.memref_squeeze %13 : memref<1x!tpu.dma_semaphore, #tpu.memory_space<semaphore_mem>> -> memref<!tpu.dma_semaphore, #tpu.memory_space<semaphore_mem>>
    tpu.enqueue_dma source(%11 : memref<1x32xf32, #tpu.memory_space<any>>) target(%12 : memref<1x32xf32, #tpu.memory_space<vmem>>) target_semaphore(%14 : memref<!tpu.dma_semaphore, #tpu.memory_space<semaphore_mem>>)
    %c2_i32 = arith.constant 2 : i32
    %15 = arith.addi %0, %c2_i32 : i32
    %16 = arith.index_cast %15 : i32 to index
    %17 = memref.load %arg1[%16] : memref<16xi32, #tpu.memory_space<smem>>
    %c2_i32_8 = arith.constant 2 : i32
    %c0_i32_9 = arith.constant 0 : i32
    %18 = tpu.memref_slice %arg2[%17, %c0_i32_9] : memref<64x32xf32, #tpu.memory_space<any>> -> memref<1x32xf32, #tpu.memory_space<any>>
    %c2_i32_10 = arith.constant 2 : i32
    %c0_i32_11 = arith.constant 0 : i32
    %19 = tpu.memref_slice %arg3[%c2_i32_10, %c0_i32_11] : memref<8x32xf32, #tpu.memory_space<vmem>> -> memref<1x32xf32, #tpu.memory_space<vmem>>
    %20 = tpu.memref_slice %arg4[%c2_i32_8] : memref<8x!tpu.dma_semaphore, #tpu.memory_space<semaphore_mem>> -> memref<1x!tpu.dma_semaphore, #tpu.memory_space<semaphore_mem>>
    %21 = tpu.memref_squeeze %20 : memref<1x!tpu.dma_semaphore, #tpu.memory_space<semaphore_mem>> -> memref<!tpu.dma_semaphore, #tpu.memory_space<semaphore_mem>>
    tpu.enqueue_dma source(%18 : memref<1x32xf32, #tpu.memory_space<any>>) target(%19 : memref<1x32xf32, #tpu.memory_space<vmem>>) target_semaphore(%21 : memref<!tpu.dma_semaphore, #tpu.memory_space<semaphore_mem>>)
    %c3_i32 = arith.constant 3 : i32
    %22 = arith.addi %0, %c3_i32 : i32
    %23 = arith.index_cast %22 : i32 to index
    %24 = memref.load %arg1[%23] : memref<16xi32, #tpu.memory_space<smem>>
    %c3_i32_12 = arith.constant 3 : i32
    %c0_i32_13 = arith.constant 0 : i32
    %25 = tpu.memref_slice %arg2[%24, %c0_i32_13] : memref<64x32xf32, #tpu.memory_space<any>> -> memref<1x32xf32, #tpu.memory_space<any>>
    %c3_i32_14 = arith.constant 3 : i32
    %c0_i32_15 = arith.constant 0 : i32
    %26 = tpu.memref_slice %arg3[%c3_i32_14, %c0_i32_15] : memref<8x32xf32, #tpu.memory_space<vmem>> -> memref<1x32xf32, #tpu.memory_space<vmem>>
    %27 = tpu.memref_slice %arg4[%c3_i32_12] : memref<8x!tpu.dma_semaphore, #tpu.memory_space<semaphore_mem>> -> memref<1x!tpu.dma_semaphore, #tpu.memory_space<semaphore_mem>>
    %28 = tpu.memref_squeeze %27 : memref<1x!tpu.dma_semaphore, #tpu.memory_space<semaphore_mem>> -> memref<!tpu.dma_semaphore, #tpu.memory_space<semaphore_mem>>
    tpu.enqueue_dma source(%25 : memref<1x32xf32, #tpu.memory_space<any>>) target(%26 : memref<1x32xf32, #tpu.memory_space<vmem>>) target_semaphore(%28 : memref<!tpu.dma_semaphore, #tpu.memory_space<semaphore_mem>>)
    %c4_i32 = arith.constant 4 : i32
    %29 = arith.addi %0, %c4_i32 : i32
    %30 = arith.index_cast %29 : i32 to index
    %31 = memref.load %arg1[%30] : memref<16xi32, #tpu.memory_space<smem>>
    %c4_i32_16 = arith.constant 4 : i32
    %c0_i32_17 = arith.constant 0 : i32
    %32 = tpu.memref_slice %arg2[%31, %c0_i32_17] : memref<64x32xf32, #tpu.memory_space<any>> -> memref<1x32xf32, #tpu.memory_space<any>>
    %c4_i32_18 = arith.constant 4 : i32
    %c0_i32_19 = arith.constant 0 : i32
    %33 = tpu.memref_slice %arg3[%c4_i32_18, %c0_i32_19] : memref<8x32xf32, #tpu.memory_space<vmem>> -> memref<1x32xf32, #tpu.memory_space<vmem>>
    %34 = tpu.memref_slice %arg4[%c4_i32_16] : memref<8x!tpu.dma_semaphore, #tpu.memory_space<semaphore_mem>> -> memref<1x!tpu.dma_semaphore, #tpu.memory_space<semaphore_mem>>
    %35 = tpu.memref_squeeze %34 : memref<1x!tpu.dma_semaphore, #tpu.memory_space<semaphore_mem>> -> memref<!tpu.dma_semaphore, #tpu.memory_space<semaphore_mem>>
    tpu.enqueue_dma source(%32 : memref<1x32xf32, #tpu.memory_space<any>>) target(%33 : memref<1x32xf32, #tpu.memory_space<vmem>>) target_semaphore(%35 : memref<!tpu.dma_semaphore, #tpu.memory_space<semaphore_mem>>)
    %c5_i32 = arith.constant 5 : i32
    %36 = arith.addi %0, %c5_i32 : i32
    %37 = arith.index_cast %36 : i32 to index
    %38 = memref.load %arg1[%37] : memref<16xi32, #tpu.memory_space<smem>>
    %c5_i32_20 = arith.constant 5 : i32
    %c0_i32_21 = arith.constant 0 : i32
    %39 = tpu.memref_slice %arg2[%38, %c0_i32_21] : memref<64x32xf32, #tpu.memory_space<any>> -> memref<1x32xf32, #tpu.memory_space<any>>
    %c5_i32_22 = arith.constant 5 : i32
    %c0_i32_23 = arith.constant 0 : i32
    %40 = tpu.memref_slice %arg3[%c5_i32_22, %c0_i32_23] : memref<8x32xf32, #tpu.memory_space<vmem>> -> memref<1x32xf32, #tpu.memory_space<vmem>>
    %41 = tpu.memref_slice %arg4[%c5_i32_20] : memref<8x!tpu.dma_semaphore, #tpu.memory_space<semaphore_mem>> -> memref<1x!tpu.dma_semaphore, #tpu.memory_space<semaphore_mem>>
    %42 = tpu.memref_squeeze %41 : memref<1x!tpu.dma_semaphore, #tpu.memory_space<semaphore_mem>> -> memref<!tpu.dma_semaphore, #tpu.memory_space<semaphore_mem>>
    tpu.enqueue_dma source(%39 : memref<1x32xf32, #tpu.memory_space<any>>) target(%40 : memref<1x32xf32, #tpu.memory_space<vmem>>) target_semaphore(%42 : memref<!tpu.dma_semaphore, #tpu.memory_space<semaphore_mem>>)
    %c6_i32 = arith.constant 6 : i32
    %43 = arith.addi %0, %c6_i32 : i32
    %44 = arith.index_cast %43 : i32 to index
    %45 = memref.load %arg1[%44] : memref<16xi32, #tpu.memory_space<smem>>
    %c6_i32_24 = arith.constant 6 : i32
    %c0_i32_25 = arith.constant 0 : i32
    %46 = tpu.memref_slice %arg2[%45, %c0_i32_25] : memref<64x32xf32, #tpu.memory_space<any>> -> memref<1x32xf32, #tpu.memory_space<any>>
    %c6_i32_26 = arith.constant 6 : i32
    %c0_i32_27 = arith.constant 0 : i32
    %47 = tpu.memref_slice %arg3[%c6_i32_26, %c0_i32_27] : memref<8x32xf32, #tpu.memory_space<vmem>> -> memref<1x32xf32, #tpu.memory_space<vmem>>
    %48 = tpu.memref_slice %arg4[%c6_i32_24] : memref<8x!tpu.dma_semaphore, #tpu.memory_space<semaphore_mem>> -> memref<1x!tpu.dma_semaphore, #tpu.memory_space<semaphore_mem>>
    %49 = tpu.memref_squeeze %48 : memref<1x!tpu.dma_semaphore, #tpu.memory_space<semaphore_mem>> -> memref<!tpu.dma_semaphore, #tpu.memory_space<semaphore_mem>>
    tpu.enqueue_dma source(%46 : memref<1x32xf32, #tpu.memory_space<any>>) target(%47 : memref<1x32xf32, #tpu.memory_space<vmem>>) target_semaphore(%49 : memref<!tpu.dma_semaphore, #tpu.memory_space<semaphore_mem>>)
    %c7_i32 = arith.constant 7 : i32
    %50 = arith.addi %0, %c7_i32 : i32
    %51 = arith.index_cast %50 : i32 to index
    %52 = memref.load %arg1[%51] : memref<16xi32, #tpu.memory_space<smem>>
    %c7_i32_28 = arith.constant 7 : i32
    %c0_i32_29 = arith.constant 0 : i32
    %53 = tpu.memref_slice %arg2[%52, %c0_i32_29] : memref<64x32xf32, #tpu.memory_space<any>> -> memref<1x32xf32, #tpu.memory_space<any>>
    %c7_i32_30 = arith.constant 7 : i32
    %c0_i32_31 = arith.constant 0 : i32
    %54 = tpu.memref_slice %arg3[%c7_i32_30, %c0_i32_31] : memref<8x32xf32, #tpu.memory_space<vmem>> -> memref<1x32xf32, #tpu.memory_space<vmem>>
    %55 = tpu.memref_slice %arg4[%c7_i32_28] : memref<8x!tpu.dma_semaphore, #tpu.memory_space<semaphore_mem>> -> memref<1x!tpu.dma_semaphore, #tpu.memory_space<semaphore_mem>>
    %56 = tpu.memref_squeeze %55 : memref<1x!tpu.dma_semaphore, #tpu.memory_space<semaphore_mem>> -> memref<!tpu.dma_semaphore, #tpu.memory_space<semaphore_mem>>
    tpu.enqueue_dma source(%53 : memref<1x32xf32, #tpu.memory_space<any>>) target(%54 : memref<1x32xf32, #tpu.memory_space<vmem>>) target_semaphore(%56 : memref<!tpu.dma_semaphore, #tpu.memory_space<semaphore_mem>>)
    %c0_i32_32 = arith.constant 0 : i32
    %c8_i32_33 = arith.constant 8 : i32
    %57 = arith.addi %c0_i32_32, %c8_i32_33 : i32
    %c1_i32_34 = arith.constant 1 : i32
    scf.for %arg5 = %c0_i32_32 to %57 step %c1_i32_34  : i32 {
      %c8_i32_39 = arith.constant 8 : i32
      %62 = arith.remsi %arg5, %c8_i32_39 : i32
      %63 = arith.addi %0, %arg5 : i32
      %64 = arith.index_cast %63 : i32 to index
      %65 = memref.load %arg1[%64] : memref<16xi32, #tpu.memory_space<smem>>
      %c0_i32_40 = arith.constant 0 : i32
      %66 = tpu.memref_slice %arg2[%65, %c0_i32_40] : memref<64x32xf32, #tpu.memory_space<any>> -> memref<1x32xf32, #tpu.memory_space<any>>
      %c0_i32_41 = arith.constant 0 : i32
      %67 = tpu.memref_slice %arg3[%arg5, %c0_i32_41] : memref<8x32xf32, #tpu.memory_space<vmem>> -> memref<1x32xf32, #tpu.memory_space<vmem>>
      %68 = tpu.memref_slice %arg4[%62] : memref<8x!tpu.dma_semaphore, #tpu.memory_space<semaphore_mem>> -> memref<1x!tpu.dma_semaphore, #tpu.memory_space<semaphore_mem>>
      %69 = tpu.memref_squeeze %68 : memref<1x!tpu.dma_semaphore, #tpu.memory_space<semaphore_mem>> -> memref<!tpu.dma_semaphore, #tpu.memory_space<semaphore_mem>>
      tpu.wait_dma2 semaphore(%69 : memref<!tpu.dma_semaphore, #tpu.memory_space<semaphore_mem>>) src(%66 : memref<1x32xf32, #tpu.memory_space<any>>) dst(%67 : memref<1x32xf32, #tpu.memory_space<vmem>>)
      %c8_i32_42 = arith.constant 8 : i32
      %70 = arith.addi %arg5, %c8_i32_42 : i32
      %c8_i32_43 = arith.constant 8 : i32
      %71 = arith.cmpi slt, %70, %c8_i32_43 : i32
      %72 = arith.extui %71 : i1 to i32
      %c0_i32_44 = arith.constant 0 : i32
      %73 = arith.cmpi ne, %72, %c0_i32_44 : i32
      scf.if %73 {
        %c8_i32_45 = arith.constant 8 : i32
        %74 = arith.addi %arg5, %c8_i32_45 : i32
        %75 = arith.addi %0, %74 : i32
        %76 = arith.index_cast %75 : i32 to index
        %77 = memref.load %arg1[%76] : memref<16xi32, #tpu.memory_space<smem>>
        %c0_i32_46 = arith.constant 0 : i32
        %78 = tpu.memref_slice %arg2[%77, %c0_i32_46] : memref<64x32xf32, #tpu.memory_space<any>> -> memref<1x32xf32, #tpu.memory_space<any>>
        %c0_i32_47 = arith.constant 0 : i32
        %79 = tpu.memref_slice %arg3[%74, %c0_i32_47] : memref<8x32xf32, #tpu.memory_space<vmem>> -> memref<1x32xf32, #tpu.memory_space<vmem>>
        %80 = tpu.memref_slice %arg4[%62] : memref<8x!tpu.dma_semaphore, #tpu.memory_space<semaphore_mem>> -> memref<1x!tpu.dma_semaphore, #tpu.memory_space<semaphore_mem>>
        %81 = tpu.memref_squeeze %80 : memref<1x!tpu.dma_semaphore, #tpu.memory_space<semaphore_mem>> -> memref<!tpu.dma_semaphore, #tpu.memory_space<semaphore_mem>>
        tpu.enqueue_dma source(%78 : memref<1x32xf32, #tpu.memory_space<any>>) target(%79 : memref<1x32xf32, #tpu.memory_space<vmem>>) target_semaphore(%81 : memref<!tpu.dma_semaphore, #tpu.memory_space<semaphore_mem>>)
      } else {
      }
    }
    %c8_i32_35 = arith.constant 8 : i32
    %c0 = arith.constant 0 : index
    %c0_36 = arith.constant 0 : index
    %58 = vector.load %arg3[%c0, %c0_36] : memref<8x32xf32, #tpu.memory_space<vmem>>, vector<8x32xf32>
    %cst = arith.constant 5.65685415 : f32
    %59 = vector.broadcast %cst : f32 to vector<8x32xf32>
    %60 = arith.mulf %58, %59 : vector<8x32xf32>
    %c0_37 = arith.constant 0 : index
    %c0_38 = arith.constant 0 : index
    %61 = vector.load %arg3[%c0_37, %c0_38] : memref<8x32xf32, #tpu.memory_space<vmem>>, vector<8x32xf32>
    tpu.vector_store %arg3[%c0_37, %c0_38], %60 {strides = array<i32>} : memref<8x32xf32, #tpu.memory_space<vmem>>, vector<8x32xf32>,
    return
  }
  func.func @transform_1(%arg0: i32, %arg1: memref<16xi32, #tpu.memory_space<smem>>) -> (i32, i32) {
    %c0_i32 = arith.constant 0 : i32
    %c0_i32_0 = arith.constant 0 : i32
    return %arg0, %c0_i32 : i32, i32
  }
}

</mosaic_0001>

<llo_original>
// kernel: tpu_custom_call.1
$region0: #{tpu_custom_call.1}
  #allocation0 [shape = 'u32[]', space=smem, size = 0x4, offset = 0x4, fixed_abs, tag = 'smem constant byte address 0x4 - core index']
  #allocation1 [shape = 'u32[144,128]{1,0:T(1,128)}', space=vmem, size = 0x12000, scoped, tag = 'internal scratch']
  #allocation2 [shape = 's32[8]{0}', space=sflag, size = 0x20, scoped, tag = 'scratch operand']
  #allocation3 [shape = 's32[1]{0}', space=sflag, size = 0x4, scoped, tag = 'scoped memory for tpu_custom_call.1']
  #allocation4 [shape = 'u8[512]{0}', space=smem, size = 0x200, scoped, tag = 'prefetched SMEM operand 0']
  #allocation7 [shape = 's32[]', space=sflag, size = 0x4, offset = 0, fixed_abs, tag = 'sflag constant byte address 0x0 - dummy sync flag']
  #allocation8 [shape = 's32[]', space=sflag, size = 0x4, offset = 0, fixed_abs, tag = 'sflag constant byte address 0x0 - dummy sync flag']
  #allocation9 [shape = 's32[]', space=sflag, size = 0x4, offset = 0, fixed_abs, tag = 'sflag constant byte address 0x0 - dummy sync flag']
  #allocation10 [shape = 's32[]', space=sflag, size = 0x4, offset = 0, fixed_abs, tag = 'sflag constant byte address 0x0 - dummy sync flag']
  #allocation11 [shape = 's32[]', space=sflag, size = 0x4, offset = 0, fixed_abs, tag = 'sflag constant byte address 0x0 - dummy sync flag']
  #allocation12 [shape = 's32[]', space=sflag, size = 0x4, offset = 0, fixed_abs, tag = 'sflag constant byte address 0x0 - dummy sync flag']
  #allocation13 [shape = 's32[]', space=sflag, size = 0x4, offset = 0, fixed_abs, tag = 'sflag constant byte address 0x0 - dummy sync flag']
  #allocation14 [shape = 's32[]', space=sflag, size = 0x4, offset = 0, fixed_abs, tag = 'sflag constant byte address 0x0 - dummy sync flag']
  #allocation15 [shape = 's32[]', space=sflag, size = 0x4, offset = 0, fixed_abs, tag = 'sflag constant byte address 0x0 - dummy sync flag']
  %s0 = inlined_call_operand.vmem [shape: s32[16], index: 0, kind: input, shape index: {}]
  %s1 = inlined_call_operand.vmem [shape: f32[64,32], index: 1, kind: input, shape index: {}]
  %s2 = inlined_call_operand.hbm [shape: f32[16,32], index: 2, kind: output, shape index: {}]
  %s3 = sld [smem:[#allocation0]]
  $region306: #{tpu_custom_call.1} parent=0
    _
  %s5 = ssub.s32 1, %s3
  %s6 = scalar_select 0, %s5, %s3
  %s7 = sshll.u32 %s0, 4
  %s8 = int_to_ptr.vmem [resolvable:$true] %s7
  %10 = dma.vmem_to_smem %s8, 16, [#allocation4], [#allocation3]
  %11 = dma.done [#allocation3], 16
  %12 = sfence
  $region1: #{tpu_custom_call.1} parent=0
    #allocation5 [shape = 'u8[8192]{0}', space=vmem, size = 0x2000, scoped, tag = 'output window, operand 0']
    #allocation6 [shape = 's32[2]{0}', space=sflag, size = 0x8, scoped, tag = 'scoped memory for tpu_custom_call.1']
    %13 = vsyncpa [#allocation6], 0
    %s14 = scalar_lea.sflag [#allocation6], 1
    %15 = vsyncpa %s14, 0
    loop: start=0, step=1, limit=3
    $region2: #{tpu_custom_call.1} parent=1 // loop_pre_header
      _
    $region3: #{tpu_custom_call.1} parent=1 // loop_header
      %s17 = sphi 0, %s21
      %p18 = scmp.ge.s32.totalorder %s17, 3
      %s26 = sphi 0, %s28
      %s29 = sphi 0, %s26
      %s39 = sphi 0, %s29
    $region4: #{tpu_custom_call.1} parent=1 // loop_header_branch
      %20 = sbr.rel (%p18) target = $region8
    $region5: #{tpu_custom_call.1} parent=1 // loop_body
      %s22 = ssub.s32 %s17, 1
      %s23 = sadd.s32 %s17, 1
      %s24 = ssub.s32 %s17, %s23
      %p25 = scmp.eq.s32.totalorder %s24, 0
      %s27 = sadd.s32 %s26, 1
      %s28 = scalar_select %p25, %s26, %s27
      %p30 = pneg %p25
      %p31 = scmp.eq.s32.totalorder %s17, 1
      %p32 = por %p30, %p31
      %p33 = scmp.ne.s32.totalorder %s26, %s29
      %p34 = scmp.eq.s32.totalorder %s17, 0
      %p35 = por %p33, %p34
      %p36 = scmp.ne.s32.totalorder %s26, %s29
      %p37 = scmp.eq.s32.totalorder %s22, 1
      %p38 = por %p36, %p37
      %p40 = scmp.ne.s32.totalorder %s29, %s39
      %p41 = scmp.eq.s32.totalorder %s22, 0
      %p42 = por %p40, %p41
      %p43 = scmp.lt.s32.totalorder %s17, 2
      // Predicated region
      $region9: #{tpu_custom_call.1} parent=5 // pred_check
        %p44 = pneg %p43
      $region10: #{tpu_custom_call.1} parent=5 // pred_check_branch
        %46 = sbr.rel (%p44) target = $region12
      $region11: #{tpu_custom_call.1} parent=5 // pred_region
        %p47 = pneg %p35
        %p48 = pneg %p32
        %s49 = sand.u32 %s26, 1
        %s50 = scalar_lea.sflag [#allocation6], %s49
        %s51 = sand.u32 %s26, 1
        %s52 = smul.addr %s51, 8
        %s53 = scalar_lea.vmem [#allocation5], %s52
        %s54 = smul.u32 %s17, 8
        %s55 = sld [smem:[#allocation4 + %s54]]
        %s56 = scalar_lea.vmem %s1, %s55
        %p58 = scmp.lt.u32.totalorder 1, 8
        %p59 = pneg %p58
        // Predicated region
        $region13: #{tpu_custom_call.1} parent=11 // pred_check
          _
        $region14: #{tpu_custom_call.1} parent=11 // pred_check_branch
          %61 = sbr.rel (%p58) target = $region16
        $region15: #{tpu_custom_call.1} parent=11 // pred_region
          %s77 = sand.u32 1, 7
          %p78 = scmp.eq.s32.totalorder %s77, 0
          %p79 = pneg %p78
          // Predicated region
          $region28: #{tpu_custom_call.1} parent=15 // pred_check
            _
          $region29: #{tpu_custom_call.1} parent=15 // pred_check_branch
            %81 = sbr.rel (%p78) target = $region31
          $region30: #{tpu_custom_call.1} parent=15 // pred_region
            %s82 = sand.u32 1, 7
            %s83 = ssub.s32 1, %s82
            %s84 = scalar_lea.vmem %s56, %s83
            %s85 = ssub.s32 1, %s82
            %s86 = scalar_lea.vmem %s53, %s85 [#allocation5]
            %s87 = sshll.u32 1, %s82
            %s88 = ssub.s32 %s87, 1
            loop: start=0, step=1, limit=1
            $region32: #{tpu_custom_call.1} parent=30 // loop_pre_header
              _
            $region33: #{tpu_custom_call.1} parent=30 // loop_header
              %s90 = sphi 0, %s94
              %p91 = scmp.ge.s32.totalorder %s90, 1
              %s95 = sphi %s84, %s84
              %s96 = sphi %s86, %s86
            $region34: #{tpu_custom_call.1} parent=30 // loop_header_branch
              %93 = sbr.rel (%p91) target = $region38
            $region35: #{tpu_custom_call.1} parent=30 // loop_body
              %v97 = vld [vmem:[%s95] sm:%s88]
              %98 = vst [vmem:[%s96] sm:%s88] %v97
            $region36: #{tpu_custom_call.1} parent=30 // loop_footer
              %s94 = sadd.s32 1, %s90
            $region37: #{tpu_custom_call.1} parent=30 // loop_footer_branch
              %89 = sbr.rel target = $region33
            $region38: #{tpu_custom_call.1} parent=30 // loop_exit
              _
          $region31: #{tpu_custom_call.1} parent=15 // pred_fallthru
            _
        $region16: #{tpu_custom_call.1} parent=11 // pred_fallthru
          _
        // Predicated region
        $region17: #{tpu_custom_call.1} parent=11 // pred_check
          %p62 = pneg %p58
        $region18: #{tpu_custom_call.1} parent=11 // pred_check_branch
          %64 = sbr.rel (%p62) target = $region20
        $region19: #{tpu_custom_call.1} parent=11 // pred_region
          %s65 = sshll.u32 1, 1
          %s66 = ssub.s32 %s65, 1
          loop: start=0, step=1, limit=1
          $region21: #{tpu_custom_call.1} parent=19 // loop_pre_header
            _
          $region22: #{tpu_custom_call.1} parent=19 // loop_header
            %s68 = sphi 0, %s72
            %p69 = scmp.ge.s32.totalorder %s68, 1
            %s73 = sphi %s56, %s56
            %s74 = sphi %s53, %s53
          $region23: #{tpu_custom_call.1} parent=19 // loop_header_branch
            %71 = sbr.rel (%p69) target = $region27
          $region24: #{tpu_custom_call.1} parent=19 // loop_body
            %v75 = vld [vmem:[%s73] sm:%s66]
            %76 = vst [vmem:[%s74] sm:%s66] %v75
          $region25: #{tpu_custom_call.1} parent=19 // loop_footer
            %s72 = sadd.s32 1, %s68
          $region26: #{tpu_custom_call.1} parent=19 // loop_footer_branch
            %67 = sbr.rel target = $region22
          $region27: #{tpu_custom_call.1} parent=19 // loop_exit
            _
        $region20: #{tpu_custom_call.1} parent=11 // pred_fallthru
          _
        // Predicated region
        $region39: #{tpu_custom_call.1} parent=11 // pred_check
          _
        $region40: #{tpu_custom_call.1} parent=11 // pred_check_branch
          %101 = sbr.rel (0) target = $region42
        $region41: #{tpu_custom_call.1} parent=11 // pred_region
          %102 = vsyncadd [#allocation2], 16
        $region42: #{tpu_custom_call.1} parent=11 // pred_fallthru
          _
        %s103 = sadd.s32 %s54, 1
        %s104 = sld [smem:[#allocation4 + %s103]]
        %s105 = scalar_lea.vmem %s1, %s104
        %s106 = scalar_lea.vmem %s53, 1 [#allocation5]
        %s107 = scalar_lea.sflag [#allocation2], 1
        %p109 = scmp.lt.u32.totalorder 1, 8
        %p110 = pneg %p109
        // Predicated region
        $region43: #{tpu_custom_call.1} parent=11 // pred_check
          _
        $region44: #{tpu_custom_call.1} parent=11 // pred_check_branch
          %112 = sbr.rel (%p109) target = $region46
        $region45: #{tpu_custom_call.1} parent=11 // pred_region
          %s128 = sand.u32 1, 7
          %p129 = scmp.eq.s32.totalorder %s128, 0
          %p130 = pneg %p129
          // Predicated region
          $region58: #{tpu_custom_call.1} parent=45 // pred_check
            _
          $region59: #{tpu_custom_call.1} parent=45 // pred_check_branch
            %132 = sbr.rel (%p129) target = $region61
          $region60: #{tpu_custom_call.1} parent=45 // pred_region
            %s133 = sand.u32 1, 7
            %s134 = ssub.s32 1, %s133
            %s135 = scalar_lea.vmem %s105, %s134
            %s136 = ssub.s32 1, %s133
            %s137 = scalar_lea.vmem %s106, %s136 [#allocation5]
            %s138 = sshll.u32 1, %s133
            %s139 = ssub.s32 %s138, 1
            loop: start=0, step=1, limit=1
            $region62: #{tpu_custom_call.1} parent=60 // loop_pre_header
              _
            $region63: #{tpu_custom_call.1} parent=60 // loop_header
              %s141 = sphi 0, %s145
              %p142 = scmp.ge.s32.totalorder %s141, 1
              %s146 = sphi %s135, %s135
              %s147 = sphi %s137, %s137
            $region64: #{tpu_custom_call.1} parent=60 // loop_header_branch
              %144 = sbr.rel (%p142) target = $region68
            $region65: #{tpu_custom_call.1} parent=60 // loop_body
              %v148 = vld [vmem:[%s146] sm:%s139]
              %149 = vst [vmem:[%s147] sm:%s139] %v148
            $region66: #{tpu_custom_call.1} parent=60 // loop_footer
              %s145 = sadd.s32 1, %s141
            $region67: #{tpu_custom_call.1} parent=60 // loop_footer_branch
              %140 = sbr.rel target = $region63
            $region68: #{tpu_custom_call.1} parent=60 // loop_exit
              _
          $region61: #{tpu_custom_call.1} parent=45 // pred_fallthru
            _
        $region46: #{tpu_custom_call.1} parent=11 // pred_fallthru
          _
        // Predicated region
        $region47: #{tpu_custom_call.1} parent=11 // pred_check
          %p113 = pneg %p109
        $region48: #{tpu_custom_call.1} parent=11 // pred_check_branch
          %115 = sbr.rel (%p113) target = $region50
        $region49: #{tpu_custom_call.1} parent=11 // pred_region
          %s116 = sshll.u32 1, 1
          %s117 = ssub.s32 %s116, 1
          loop: start=0, step=1, limit=1
          $region51: #{tpu_custom_call.1} parent=49 // loop_pre_header
            _
          $region52: #{tpu_custom_call.1} parent=49 // loop_header
            %s119 = sphi 0, %s123
            %p120 = scmp.ge.s32.totalorder %s119, 1
            %s124 = sphi %s105, %s105
            %s125 = sphi %s106, %s106
          $region53: #{tpu_custom_call.1} parent=49 // loop_header_branch
            %122 = sbr.rel (%p120) target = $region57
          $region54: #{tpu_custom_call.1} parent=49 // loop_body
            %v126 = vld [vmem:[%s124] sm:%s117]
            %127 = vst [vmem:[%s125] sm:%s117] %v126
          $region55: #{tpu_custom_call.1} parent=49 // loop_footer
            %s123 = sadd.s32 1, %s119
          $region56: #{tpu_custom_call.1} parent=49 // loop_footer_branch
            %118 = sbr.rel target = $region52
          $region57: #{tpu_custom_call.1} parent=49 // loop_exit
            _
        $region50: #{tpu_custom_call.1} parent=11 // pred_fallthru
          _
        // Predicated region
        $region69: #{tpu_custom_call.1} parent=11 // pred_check
          _
        $region70: #{tpu_custom_call.1} parent=11 // pred_check_branch
          %152 = sbr.rel (0) target = $region72
        $region71: #{tpu_custom_call.1} parent=11 // pred_region
          %153 = vsyncadd %s107, 16
        $region72: #{tpu_custom_call.1} parent=11 // pred_fallthru
          _
        %s154 = sadd.s32 %s54, 2
        %s155 = sld [smem:[#allocation4 + %s154]]
        %s156 = scalar_lea.vmem %s1, %s155
        %s157 = scalar_lea.vmem %s53, 2 [#allocation5]
        %s158 = scalar_lea.sflag [#allocation2], 2
        %p160 = scmp.lt.u32.totalorder 1, 8
        %p161 = pneg %p160
        // Predicated region
        $region73: #{tpu_custom_call.1} parent=11 // pred_check
          _
        $region74: #{tpu_custom_call.1} parent=11 // pred_check_branch
          %163 = sbr.rel (%p160) target = $region76
        $region75: #{tpu_custom_call.1} parent=11 // pred_region
          %s179 = sand.u32 1, 7
          %p180 = scmp.eq.s32.totalorder %s179, 0
          %p181 = pneg %p180
          // Predicated region
          $region88: #{tpu_custom_call.1} parent=75 // pred_check
            _
          $region89: #{tpu_custom_call.1} parent=75 // pred_check_branch
            %183 = sbr.rel (%p180) target = $region91
          $region90: #{tpu_custom_call.1} parent=75 // pred_region
            %s184 = sand.u32 1, 7
            %s185 = ssub.s32 1, %s184
            %s186 = scalar_lea.vmem %s156, %s185
            %s187 = ssub.s32 1, %s184
            %s188 = scalar_lea.vmem %s157, %s187 [#allocation5]
            %s189 = sshll.u32 1, %s184
            %s190 = ssub.s32 %s189, 1
            loop: start=0, step=1, limit=1
            $region92: #{tpu_custom_call.1} parent=90 // loop_pre_header
              _
            $region93: #{tpu_custom_call.1} parent=90 // loop_header
              %s192 = sphi 0, %s196
              %p193 = scmp.ge.s32.totalorder %s192, 1
              %s197 = sphi %s186, %s186
              %s198 = sphi %s188, %s188
            $region94: #{tpu_custom_call.1} parent=90 // loop_header_branch
              %195 = sbr.rel (%p193) target = $region98
            $region95: #{tpu_custom_call.1} parent=90 // loop_body
              %v199 = vld [vmem:[%s197] sm:%s190]
              %200 = vst [vmem:[%s198] sm:%s190] %v199
            $region96: #{tpu_custom_call.1} parent=90 // loop_footer
              %s196 = sadd.s32 1, %s192
            $region97: #{tpu_custom_call.1} parent=90 // loop_footer_branch
              %191 = sbr.rel target = $region93
            $region98: #{tpu_custom_call.1} parent=90 // loop_exit
              _
          $region91: #{tpu_custom_call.1} parent=75 // pred_fallthru
            _
        $region76: #{tpu_custom_call.1} parent=11 // pred_fallthru
          _
        // Predicated region
        $region77: #{tpu_custom_call.1} parent=11 // pred_check
          %p164 = pneg %p160
        $region78: #{tpu_custom_call.1} parent=11 // pred_check_branch
          %166 = sbr.rel (%p164) target = $region80
        $region79: #{tpu_custom_call.1} parent=11 // pred_region
          %s167 = sshll.u32 1, 1
          %s168 = ssub.s32 %s167, 1
          loop: start=0, step=1, limit=1
          $region81: #{tpu_custom_call.1} parent=79 // loop_pre_header
            _
          $region82: #{tpu_custom_call.1} parent=79 // loop_header
            %s170 = sphi 0, %s174
            %p171 = scmp.ge.s32.totalorder %s170, 1
            %s175 = sphi %s156, %s156
            %s176 = sphi %s157, %s157
          $region83: #{tpu_custom_call.1} parent=79 // loop_header_branch
            %173 = sbr.rel (%p171) target = $region87
          $region84: #{tpu_custom_call.1} parent=79 // loop_body
            %v177 = vld [vmem:[%s175] sm:%s168]
            %178 = vst [vmem:[%s176] sm:%s168] %v177
          $region85: #{tpu_custom_call.1} parent=79 // loop_footer
            %s174 = sadd.s32 1, %s170
          $region86: #{tpu_custom_call.1} parent=79 // loop_footer_branch
            %169 = sbr.rel target = $region82
          $region87: #{tpu_custom_call.1} parent=79 // loop_exit
            _
        $region80: #{tpu_custom_call.1} parent=11 // pred_fallthru
          _
        // Predicated region
        $region99: #{tpu_custom_call.1} parent=11 // pred_check
          _
        $region100: #{tpu_custom_call.1} parent=11 // pred_check_branch
          %203 = sbr.rel (0) target = $region102
        $region101: #{tpu_custom_call.1} parent=11 // pred_region
          %204 = vsyncadd %s158, 16
        $region102: #{tpu_custom_call.1} parent=11 // pred_fallthru
          _
        %s205 = sadd.s32 %s54, 3
        %s206 = sld [smem:[#allocation4 + %s205]]
        %s207 = scalar_lea.vmem %s1, %s206
        %s208 = scalar_lea.vmem %s53, 3 [#allocation5]
        %s209 = scalar_lea.sflag [#allocation2], 3
        %p211 = scmp.lt.u32.totalorder 1, 8
        %p212 = pneg %p211
        // Predicated region
        $region103: #{tpu_custom_call.1} parent=11 // pred_check
          _
        $region104: #{tpu_custom_call.1} parent=11 // pred_check_branch
          %214 = sbr.rel (%p211) target = $region106
        $region105: #{tpu_custom_call.1} parent=11 // pred_region
          %s230 = sand.u32 1, 7
          %p231 = scmp.eq.s32.totalorder %s230, 0
          %p232 = pneg %p231
          // Predicated region
          $region118: #{tpu_custom_call.1} parent=105 // pred_check
            _
          $region119: #{tpu_custom_call.1} parent=105 // pred_check_branch
            %234 = sbr.rel (%p231) target = $region121
          $region120: #{tpu_custom_call.1} parent=105 // pred_region
            %s235 = sand.u32 1, 7
            %s236 = ssub.s32 1, %s235
            %s237 = scalar_lea.vmem %s207, %s236
            %s238 = ssub.s32 1, %s235
            %s239 = scalar_lea.vmem %s208, %s238 [#allocation5]
            %s240 = sshll.u32 1, %s235
            %s241 = ssub.s32 %s240, 1
            loop: start=0, step=1, limit=1
            $region122: #{tpu_custom_call.1} parent=120 // loop_pre_header
              _
            $region123: #{tpu_custom_call.1} parent=120 // loop_header
              %s243 = sphi 0, %s247
              %p244 = scmp.ge.s32.totalorder %s243, 1
              %s248 = sphi %s237, %s237
              %s249 = sphi %s239, %s239
            $region124: #{tpu_custom_call.1} parent=120 // loop_header_branch
              %246 = sbr.rel (%p244) target = $region128
            $region125: #{tpu_custom_call.1} parent=120 // loop_body
              %v250 = vld [vmem:[%s248] sm:%s241]
              %251 = vst [vmem:[%s249] sm:%s241] %v250
            $region126: #{tpu_custom_call.1} parent=120 // loop_footer
              %s247 = sadd.s32 1, %s243
            $region127: #{tpu_custom_call.1} parent=120 // loop_footer_branch
              %242 = sbr.rel target = $region123
            $region128: #{tpu_custom_call.1} parent=120 // loop_exit
              _
          $region121: #{tpu_custom_call.1} parent=105 // pred_fallthru
            _
        $region106: #{tpu_custom_call.1} parent=11 // pred_fallthru
          _
        // Predicated region
        $region107: #{tpu_custom_call.1} parent=11 // pred_check
          %p215 = pneg %p211
        $region108: #{tpu_custom_call.1} parent=11 // pred_check_branch
          %217 = sbr.rel (%p215) target = $region110
        $region109: #{tpu_custom_call.1} parent=11 // pred_region
          %s218 = sshll.u32 1, 1
          %s219 = ssub.s32 %s218, 1
          loop: start=0, step=1, limit=1
          $region111: #{tpu_custom_call.1} parent=109 // loop_pre_header
            _
          $region112: #{tpu_custom_call.1} parent=109 // loop_header
            %s221 = sphi 0, %s225
            %p222 = scmp.ge.s32.totalorder %s221, 1
            %s226 = sphi %s207, %s207
            %s227 = sphi %s208, %s208
          $region113: #{tpu_custom_call.1} parent=109 // loop_header_branch
            %224 = sbr.rel (%p222) target = $region117
          $region114: #{tpu_custom_call.1} parent=109 // loop_body
            %v228 = vld [vmem:[%s226] sm:%s219]
            %229 = vst [vmem:[%s227] sm:%s219] %v228
          $region115: #{tpu_custom_call.1} parent=109 // loop_footer
            %s225 = sadd.s32 1, %s221
          $region116: #{tpu_custom_call.1} parent=109 // loop_footer_branch
            %220 = sbr.rel target = $region112
          $region117: #{tpu_custom_call.1} parent=109 // loop_exit
            _
        $region110: #{tpu_custom_call.1} parent=11 // pred_fallthru
          _
        // Predicated region
        $region129: #{tpu_custom_call.1} parent=11 // pred_check
          _
        $region130: #{tpu_custom_call.1} parent=11 // pred_check_branch
          %254 = sbr.rel (0) target = $region132
        $region131: #{tpu_custom_call.1} parent=11 // pred_region
          %255 = vsyncadd %s209, 16
        $region132: #{tpu_custom_call.1} parent=11 // pred_fallthru
          _
        %s256 = sadd.s32 %s54, 4
        %s257 = sld [smem:[#allocation4 + %s256]]
        %s258 = scalar_lea.vmem %s1, %s257
        %s259 = scalar_lea.vmem %s53, 4 [#allocation5]
        %s260 = scalar_lea.sflag [#allocation2], 4
        %p262 = scmp.lt.u32.totalorder 1, 8
        %p263 = pneg %p262
        // Predicated region
        $region133: #{tpu_custom_call.1} parent=11 // pred_check
          _
        $region134: #{tpu_custom_call.1} parent=11 // pred_check_branch
          %265 = sbr.rel (%p262) target = $region136
        $region135: #{tpu_custom_call.1} parent=11 // pred_region
          %s281 = sand.u32 1, 7
          %p282 = scmp.eq.s32.totalorder %s281, 0
          %p283 = pneg %p282
          // Predicated region
          $region148: #{tpu_custom_call.1} parent=135 // pred_check
            _
          $region149: #{tpu_custom_call.1} parent=135 // pred_check_branch
            %285 = sbr.rel (%p282) target = $region151
          $region150: #{tpu_custom_call.1} parent=135 // pred_region
            %s286 = sand.u32 1, 7
            %s287 = ssub.s32 1, %s286
            %s288 = scalar_lea.vmem %s258, %s287
            %s289 = ssub.s32 1, %s286
            %s290 = scalar_lea.vmem %s259, %s289 [#allocation5]
            %s291 = sshll.u32 1, %s286
            %s292 = ssub.s32 %s291, 1
            loop: start=0, step=1, limit=1
            $region152: #{tpu_custom_call.1} parent=150 // loop_pre_header
              _
            $region153: #{tpu_custom_call.1} parent=150 // loop_header
              %s294 = sphi 0, %s298
              %p295 = scmp.ge.s32.totalorder %s294, 1
              %s299 = sphi %s288, %s288
              %s300 = sphi %s290, %s290
            $region154: #{tpu_custom_call.1} parent=150 // loop_header_branch
              %297 = sbr.rel (%p295) target = $region158
            $region155: #{tpu_custom_call.1} parent=150 // loop_body
              %v301 = vld [vmem:[%s299] sm:%s292]
              %302 = vst [vmem:[%s300] sm:%s292] %v301
            $region156: #{tpu_custom_call.1} parent=150 // loop_footer
              %s298 = sadd.s32 1, %s294
            $region157: #{tpu_custom_call.1} parent=150 // loop_footer_branch
              %293 = sbr.rel target = $region153
            $region158: #{tpu_custom_call.1} parent=150 // loop_exit
              _
          $region151: #{tpu_custom_call.1} parent=135 // pred_fallthru
            _
        $region136: #{tpu_custom_call.1} parent=11 // pred_fallthru
          _
        // Predicated region
        $region137: #{tpu_custom_call.1} parent=11 // pred_check
          %p266 = pneg %p262
        $region138: #{tpu_custom_call.1} parent=11 // pred_check_branch
          %268 = sbr.rel (%p266) target = $region140
        $region139: #{tpu_custom_call.1} parent=11 // pred_region
          %s269 = sshll.u32 1, 1
          %s270 = ssub.s32 %s269, 1
          loop: start=0, step=1, limit=1
          $region141: #{tpu_custom_call.1} parent=139 // loop_pre_header
            _
          $region142: #{tpu_custom_call.1} parent=139 // loop_header
            %s272 = sphi 0, %s276
            %p273 = scmp.ge.s32.totalorder %s272, 1
            %s277 = sphi %s258, %s258
            %s278 = sphi %s259, %s259
          $region143: #{tpu_custom_call.1} parent=139 // loop_header_branch
            %275 = sbr.rel (%p273) target = $region147
          $region144: #{tpu_custom_call.1} parent=139 // loop_body
            %v279 = vld [vmem:[%s277] sm:%s270]
            %280 = vst [vmem:[%s278] sm:%s270] %v279
          $region145: #{tpu_custom_call.1} parent=139 // loop_footer
            %s276 = sadd.s32 1, %s272
          $region146: #{tpu_custom_call.1} parent=139 // loop_footer_branch
            %271 = sbr.rel target = $region142
          $region147: #{tpu_custom_call.1} parent=139 // loop_exit
            _
        $region140: #{tpu_custom_call.1} parent=11 // pred_fallthru
          _
        // Predicated region
        $region159: #{tpu_custom_call.1} parent=11 // pred_check
          _
        $region160: #{tpu_custom_call.1} parent=11 // pred_check_branch
          %305 = sbr.rel (0) target = $region162
        $region161: #{tpu_custom_call.1} parent=11 // pred_region
          %306 = vsyncadd %s260, 16
        $region162: #{tpu_custom_call.1} parent=11 // pred_fallthru
          _
        %s307 = sadd.s32 %s54, 5
        %s308 = sld [smem:[#allocation4 + %s307]]
        %s309 = scalar_lea.vmem %s1, %s308
        %s310 = scalar_lea.vmem %s53, 5 [#allocation5]
        %s311 = scalar_lea.sflag [#allocation2], 5
        %p313 = scmp.lt.u32.totalorder 1, 8
        %p314 = pneg %p313
        // Predicated region
        $region163: #{tpu_custom_call.1} parent=11 // pred_check
          _
        $region164: #{tpu_custom_call.1} parent=11 // pred_check_branch
          %316 = sbr.rel (%p313) target = $region166
        $region165: #{tpu_custom_call.1} parent=11 // pred_region
          %s332 = sand.u32 1, 7
          %p333 = scmp.eq.s32.totalorder %s332, 0
          %p334 = pneg %p333
          // Predicated region
          $region178: #{tpu_custom_call.1} parent=165 // pred_check
            _
          $region179: #{tpu_custom_call.1} parent=165 // pred_check_branch
            %336 = sbr.rel (%p333) target = $region181
          $region180: #{tpu_custom_call.1} parent=165 // pred_region
            %s337 = sand.u32 1, 7
            %s338 = ssub.s32 1, %s337
            %s339 = scalar_lea.vmem %s309, %s338
            %s340 = ssub.s32 1, %s337
            %s341 = scalar_lea.vmem %s310, %s340 [#allocation5]
            %s342 = sshll.u32 1, %s337
            %s343 = ssub.s32 %s342, 1
            loop: start=0, step=1, limit=1
            $region182: #{tpu_custom_call.1} parent=180 // loop_pre_header
              _
            $region183: #{tpu_custom_call.1} parent=180 // loop_header
              %s345 = sphi 0, %s349
              %p346 = scmp.ge.s32.totalorder %s345, 1
              %s350 = sphi %s339, %s339
              %s351 = sphi %s341, %s341
            $region184: #{tpu_custom_call.1} parent=180 // loop_header_branch
              %348 = sbr.rel (%p346) target = $region188
            $region185: #{tpu_custom_call.1} parent=180 // loop_body
              %v352 = vld [vmem:[%s350] sm:%s343]
              %353 = vst [vmem:[%s351] sm:%s343] %v352
            $region186: #{tpu_custom_call.1} parent=180 // loop_footer
              %s349 = sadd.s32 1, %s345
            $region187: #{tpu_custom_call.1} parent=180 // loop_footer_branch
              %344 = sbr.rel target = $region183
            $region188: #{tpu_custom_call.1} parent=180 // loop_exit
              _
          $region181: #{tpu_custom_call.1} parent=165 // pred_fallthru
            _
        $region166: #{tpu_custom_call.1} parent=11 // pred_fallthru
          _
        // Predicated region
        $region167: #{tpu_custom_call.1} parent=11 // pred_check
          %p317 = pneg %p313
        $region168: #{tpu_custom_call.1} parent=11 // pred_check_branch
          %319 = sbr.rel (%p317) target = $region170
        $region169: #{tpu_custom_call.1} parent=11 // pred_region
          %s320 = sshll.u32 1, 1
          %s321 = ssub.s32 %s320, 1
          loop: start=0, step=1, limit=1
          $region171: #{tpu_custom_call.1} parent=169 // loop_pre_header
            _
          $region172: #{tpu_custom_call.1} parent=169 // loop_header
            %s323 = sphi 0, %s327
            %p324 = scmp.ge.s32.totalorder %s323, 1
            %s328 = sphi %s309, %s309
            %s329 = sphi %s310, %s310
          $region173: #{tpu_custom_call.1} parent=169 // loop_header_branch
            %326 = sbr.rel (%p324) target = $region177
          $region174: #{tpu_custom_call.1} parent=169 // loop_body
            %v330 = vld [vmem:[%s328] sm:%s321]
            %331 = vst [vmem:[%s329] sm:%s321] %v330
          $region175: #{tpu_custom_call.1} parent=169 // loop_footer
            %s327 = sadd.s32 1, %s323
          $region176: #{tpu_custom_call.1} parent=169 // loop_footer_branch
            %322 = sbr.rel target = $region172
          $region177: #{tpu_custom_call.1} parent=169 // loop_exit
            _
        $region170: #{tpu_custom_call.1} parent=11 // pred_fallthru
          _
        // Predicated region
        $region189: #{tpu_custom_call.1} parent=11 // pred_check
          _
        $region190: #{tpu_custom_call.1} parent=11 // pred_check_branch
          %356 = sbr.rel (0) target = $region192
        $region191: #{tpu_custom_call.1} parent=11 // pred_region
          %357 = vsyncadd %s311, 16
        $region192: #{tpu_custom_call.1} parent=11 // pred_fallthru
          _
        %s358 = sadd.s32 %s54, 6
        %s359 = sld [smem:[#allocation4 + %s358]]
        %s360 = scalar_lea.vmem %s1, %s359
        %s361 = scalar_lea.vmem %s53, 6 [#allocation5]
        %s362 = scalar_lea.sflag [#allocation2], 6
        %p364 = scmp.lt.u32.totalorder 1, 8
        %p365 = pneg %p364
        // Predicated region
        $region193: #{tpu_custom_call.1} parent=11 // pred_check
          _
        $region194: #{tpu_custom_call.1} parent=11 // pred_check_branch
          %367 = sbr.rel (%p364) target = $region196
        $region195: #{tpu_custom_call.1} parent=11 // pred_region
          %s383 = sand.u32 1, 7
          %p384 = scmp.eq.s32.totalorder %s383, 0
          %p385 = pneg %p384
          // Predicated region
          $region208: #{tpu_custom_call.1} parent=195 // pred_check
            _
          $region209: #{tpu_custom_call.1} parent=195 // pred_check_branch
            %387 = sbr.rel (%p384) target = $region211
          $region210: #{tpu_custom_call.1} parent=195 // pred_region
            %s388 = sand.u32 1, 7
            %s389 = ssub.s32 1, %s388
            %s390 = scalar_lea.vmem %s360, %s389
            %s391 = ssub.s32 1, %s388
            %s392 = scalar_lea.vmem %s361, %s391 [#allocation5]
            %s393 = sshll.u32 1, %s388
            %s394 = ssub.s32 %s393, 1
            loop: start=0, step=1, limit=1
            $region212: #{tpu_custom_call.1} parent=210 // loop_pre_header
              _
            $region213: #{tpu_custom_call.1} parent=210 // loop_header
              %s396 = sphi 0, %s400
              %p397 = scmp.ge.s32.totalorder %s396, 1
              %s401 = sphi %s390, %s390
              %s402 = sphi %s392, %s392
            $region214: #{tpu_custom_call.1} parent=210 // loop_header_branch
              %399 = sbr.rel (%p397) target = $region218
            $region215: #{tpu_custom_call.1} parent=210 // loop_body
              %v403 = vld [vmem:[%s401] sm:%s394]
              %404 = vst [vmem:[%s402] sm:%s394] %v403
            $region216: #{tpu_custom_call.1} parent=210 // loop_footer
              %s400 = sadd.s32 1, %s396
            $region217: #{tpu_custom_call.1} parent=210 // loop_footer_branch
              %395 = sbr.rel target = $region213
            $region218: #{tpu_custom_call.1} parent=210 // loop_exit
              _
          $region211: #{tpu_custom_call.1} parent=195 // pred_fallthru
            _
        $region196: #{tpu_custom_call.1} parent=11 // pred_fallthru
          _
        // Predicated region
        $region197: #{tpu_custom_call.1} parent=11 // pred_check
          %p368 = pneg %p364
        $region198: #{tpu_custom_call.1} parent=11 // pred_check_branch
          %370 = sbr.rel (%p368) target = $region200
        $region199: #{tpu_custom_call.1} parent=11 // pred_region
          %s371 = sshll.u32 1, 1
          %s372 = ssub.s32 %s371, 1
          loop: start=0, step=1, limit=1
          $region201: #{tpu_custom_call.1} parent=199 // loop_pre_header
            _
          $region202: #{tpu_custom_call.1} parent=199 // loop_header
            %s374 = sphi 0, %s378
            %p375 = scmp.ge.s32.totalorder %s374, 1
            %s379 = sphi %s360, %s360
            %s380 = sphi %s361, %s361
          $region203: #{tpu_custom_call.1} parent=199 // loop_header_branch
            %377 = sbr.rel (%p375) target = $region207
          $region204: #{tpu_custom_call.1} parent=199 // loop_body
            %v381 = vld [vmem:[%s379] sm:%s372]
            %382 = vst [vmem:[%s380] sm:%s372] %v381
          $region205: #{tpu_custom_call.1} parent=199 // loop_footer
            %s378 = sadd.s32 1, %s374
          $region206: #{tpu_custom_call.1} parent=199 // loop_footer_branch
            %373 = sbr.rel target = $region202
          $region207: #{tpu_custom_call.1} parent=199 // loop_exit
            _
        $region200: #{tpu_custom_call.1} parent=11 // pred_fallthru
          _
        // Predicated region
        $region219: #{tpu_custom_call.1} parent=11 // pred_check
          _
        $region220: #{tpu_custom_call.1} parent=11 // pred_check_branch
          %407 = sbr.rel (0) target = $region222
        $region221: #{tpu_custom_call.1} parent=11 // pred_region
          %408 = vsyncadd %s362, 16
        $region222: #{tpu_custom_call.1} parent=11 // pred_fallthru
          _
        %s409 = sadd.s32 %s54, 7
        %s410 = sld [smem:[#allocation4 + %s409]]
        %s411 = scalar_lea.vmem %s1, %s410
        %s412 = scalar_lea.vmem %s53, 7 [#allocation5]
        %s413 = scalar_lea.sflag [#allocation2], 7
        %p415 = scmp.lt.u32.totalorder 1, 8
        %p416 = pneg %p415
        // Predicated region
        $region223: #{tpu_custom_call.1} parent=11 // pred_check
          _
        $region224: #{tpu_custom_call.1} parent=11 // pred_check_branch
          %418 = sbr.rel (%p415) target = $region226
        $region225: #{tpu_custom_call.1} parent=11 // pred_region
          %s434 = sand.u32 1, 7
          %p435 = scmp.eq.s32.totalorder %s434, 0
          %p436 = pneg %p435
          // Predicated region
          $region238: #{tpu_custom_call.1} parent=225 // pred_check
            _
          $region239: #{tpu_custom_call.1} parent=225 // pred_check_branch
            %438 = sbr.rel (%p435) target = $region241
          $region240: #{tpu_custom_call.1} parent=225 // pred_region
            %s439 = sand.u32 1, 7
            %s440 = ssub.s32 1, %s439
            %s441 = scalar_lea.vmem %s411, %s440
            %s442 = ssub.s32 1, %s439
            %s443 = scalar_lea.vmem %s412, %s442 [#allocation5]
            %s444 = sshll.u32 1, %s439
            %s445 = ssub.s32 %s444, 1
            loop: start=0, step=1, limit=1
            $region242: #{tpu_custom_call.1} parent=240 // loop_pre_header
              _
            $region243: #{tpu_custom_call.1} parent=240 // loop_header
              %s447 = sphi 0, %s451
              %p448 = scmp.ge.s32.totalorder %s447, 1
              %s452 = sphi %s441, %s441
              %s453 = sphi %s443, %s443
            $region244: #{tpu_custom_call.1} parent=240 // loop_header_branch
              %450 = sbr.rel (%p448) target = $region248
            $region245: #{tpu_custom_call.1} parent=240 // loop_body
              %v454 = vld [vmem:[%s452] sm:%s445]
              %455 = vst [vmem:[%s453] sm:%s445] %v454
            $region246: #{tpu_custom_call.1} parent=240 // loop_footer
              %s451 = sadd.s32 1, %s447
            $region247: #{tpu_custom_call.1} parent=240 // loop_footer_branch
              %446 = sbr.rel target = $region243
            $region248: #{tpu_custom_call.1} parent=240 // loop_exit
              _
          $region241: #{tpu_custom_call.1} parent=225 // pred_fallthru
            _
        $region226: #{tpu_custom_call.1} parent=11 // pred_fallthru
          _
        // Predicated region
        $region227: #{tpu_custom_call.1} parent=11 // pred_check
          %p419 = pneg %p415
        $region228: #{tpu_custom_call.1} parent=11 // pred_check_branch
          %421 = sbr.rel (%p419) target = $region230
        $region229: #{tpu_custom_call.1} parent=11 // pred_region
          %s422 = sshll.u32 1, 1
          %s423 = ssub.s32 %s422, 1
          loop: start=0, step=1, limit=1
          $region231: #{tpu_custom_call.1} parent=229 // loop_pre_header
            _
          $region232: #{tpu_custom_call.1} parent=229 // loop_header
            %s425 = sphi 0, %s429
            %p426 = scmp.ge.s32.totalorder %s425, 1
            %s430 = sphi %s411, %s411
            %s431 = sphi %s412, %s412
          $region233: #{tpu_custom_call.1} parent=229 // loop_header_branch
            %428 = sbr.rel (%p426) target = $region237
          $region234: #{tpu_custom_call.1} parent=229 // loop_body
            %v432 = vld [vmem:[%s430] sm:%s423]
            %433 = vst [vmem:[%s431] sm:%s423] %v432
          $region235: #{tpu_custom_call.1} parent=229 // loop_footer
            %s429 = sadd.s32 1, %s425
          $region236: #{tpu_custom_call.1} parent=229 // loop_footer_branch
            %424 = sbr.rel target = $region232
          $region237: #{tpu_custom_call.1} parent=229 // loop_exit
            _
        $region230: #{tpu_custom_call.1} parent=11 // pred_fallthru
          _
        // Predicated region
        $region249: #{tpu_custom_call.1} parent=11 // pred_check
          _
        $region250: #{tpu_custom_call.1} parent=11 // pred_check_branch
          %458 = sbr.rel (0) target = $region252
        $region251: #{tpu_custom_call.1} parent=11 // pred_region
          %459 = vsyncadd %s413, 16
        $region252: #{tpu_custom_call.1} parent=11 // pred_fallthru
          _
        loop: start=0, step=1, limit=8
        $region253: #{tpu_custom_call.1} parent=11 // loop_pre_header
          _
        $region254: #{tpu_custom_call.1} parent=11 // loop_header
          %s461 = sphi 0, %s465
          %p462 = scmp.ge.s32.totalorder %s461, 8
        $region255: #{tpu_custom_call.1} parent=11 // loop_header_branch
          %464 = sbr.rel (%p462) target = $region259
        $region256: #{tpu_custom_call.1} parent=11 // loop_body
          %p466 = scmp.lt.s32.totalorder %s461, 0
          %s467 = ssub.s32 0, %s461
          %s468 = scalar_select %p466, %s467, %s461
          %s469 = sand.u32 %s468, 7
          %s470 = ssub.s32 0, %s469
          %s471 = scalar_select %p466, %s470, %s469
          %s472 = sadd.s32 %s54, %s461
          %s473 = sld [smem:[#allocation4 + %s472]]
          %s474 = scalar_lea.sflag [#allocation2], %s471
          %s475 = smul.u32 1, 1
          %s476 = sshll.u32 %s475, 4
          %477 = dma.done %s474, %s476
          %s478 = sadd.s32 %s461, 8
          %p479 = scmp.lt.s32.totalorder %s478, 8
          // Predicated region
          $region260: #{tpu_custom_call.1} parent=256 // pred_check
            %p480 = pneg %p479
          $region261: #{tpu_custom_call.1} parent=256 // pred_check_branch
            %482 = sbr.rel (%p480) target = $region263
          $region262: #{tpu_custom_call.1} parent=256 // pred_region
            %s483 = sadd.s32 %s54, %s478
            %s484 = sld [smem:[#allocation4 + %s483]]
            %s485 = scalar_lea.vmem %s1, %s484
            %s486 = scalar_lea.vmem %s53, %s478 [#allocation5]
            %p488 = scmp.lt.u32.totalorder 1, 8
            %p489 = pneg %p488
            // Predicated region
            $region264: #{tpu_custom_call.1} parent=262 // pred_check
              _
            $region265: #{tpu_custom_call.1} parent=262 // pred_check_branch
              %491 = sbr.rel (%p488) target = $region267
            $region266: #{tpu_custom_call.1} parent=262 // pred_region
              %s507 = sand.u32 1, 7
              %p508 = scmp.eq.s32.totalorder %s507, 0
              %p509 = pneg %p508
              // Predicated region
              $region279: #{tpu_custom_call.1} parent=266 // pred_check
                _
              $region280: #{tpu_custom_call.1} parent=266 // pred_check_branch
                %511 = sbr.rel (%p508) target = $region282
              $region281: #{tpu_custom_call.1} parent=266 // pred_region
                %s512 = sand.u32 1, 7
                %s513 = ssub.s32 1, %s512
                %s514 = scalar_lea.vmem %s485, %s513
                %s515 = ssub.s32 1, %s512
                %s516 = scalar_lea.vmem %s486, %s515 [#allocation5]
                %s517 = sshll.u32 1, %s512
                %s518 = ssub.s32 %s517, 1
                loop: start=0, step=1, limit=1
                $region283: #{tpu_custom_call.1} parent=281 // loop_pre_header
                  _
                $region284: #{tpu_custom_call.1} parent=281 // loop_header
                  %s520 = sphi 0, %s524
                  %p521 = scmp.ge.s32.totalorder %s520, 1
                  %s525 = sphi %s514, %s514
                  %s526 = sphi %s516, %s516
                $region285: #{tpu_custom_call.1} parent=281 // loop_header_branch
                  %523 = sbr.rel (%p521) target = $region289
                $region286: #{tpu_custom_call.1} parent=281 // loop_body
                  %v527 = vld [vmem:[%s525] sm:%s518]
                  %528 = vst [vmem:[%s526] sm:%s518] %v527
                $region287: #{tpu_custom_call.1} parent=281 // loop_footer
                  %s524 = sadd.s32 1, %s520
                $region288: #{tpu_custom_call.1} parent=281 // loop_footer_branch
                  %519 = sbr.rel target = $region284
                $region289: #{tpu_custom_call.1} parent=281 // loop_exit
                  _
              $region282: #{tpu_custom_call.1} parent=266 // pred_fallthru
                _
            $region267: #{tpu_custom_call.1} parent=262 // pred_fallthru
              _
            // Predicated region
            $region268: #{tpu_custom_call.1} parent=262 // pred_check
              %p492 = pneg %p488
            $region269: #{tpu_custom_call.1} parent=262 // pred_check_branch
              %494 = sbr.rel (%p492) target = $region271
            $region270: #{tpu_custom_call.1} parent=262 // pred_region
              %s495 = sshll.u32 1, 1
              %s496 = ssub.s32 %s495, 1
              loop: start=0, step=1, limit=1
              $region272: #{tpu_custom_call.1} parent=270 // loop_pre_header
                _
              $region273: #{tpu_custom_call.1} parent=270 // loop_header
                %s498 = sphi 0, %s502
                %p499 = scmp.ge.s32.totalorder %s498, 1
                %s503 = sphi %s485, %s485
                %s504 = sphi %s486, %s486
              $region274: #{tpu_custom_call.1} parent=270 // loop_header_branch
                %501 = sbr.rel (%p499) target = $region278
              $region275: #{tpu_custom_call.1} parent=270 // loop_body
                %v505 = vld [vmem:[%s503] sm:%s496]
                %506 = vst [vmem:[%s504] sm:%s496] %v505
              $region276: #{tpu_custom_call.1} parent=270 // loop_footer
                %s502 = sadd.s32 1, %s498
              $region277: #{tpu_custom_call.1} parent=270 // loop_footer_branch
                %497 = sbr.rel target = $region273
              $region278: #{tpu_custom_call.1} parent=270 // loop_exit
                _
            $region271: #{tpu_custom_call.1} parent=262 // pred_fallthru
              _
            // Predicated region
            $region290: #{tpu_custom_call.1} parent=262 // pred_check
              _
            $region291: #{tpu_custom_call.1} parent=262 // pred_check_branch
              %531 = sbr.rel (0) target = $region293
            $region292: #{tpu_custom_call.1} parent=262 // pred_region
              %532 = vsyncadd %s474, 16
            $region293: #{tpu_custom_call.1} parent=262 // pred_fallthru
              _
          $region263: #{tpu_custom_call.1} parent=256 // pred_fallthru
            _
        $region257: #{tpu_custom_call.1} parent=11 // loop_footer
          %s465 = sadd.s32 1, %s461
        $region258: #{tpu_custom_call.1} parent=11 // loop_footer_branch
          %460 = sbr.rel target = $region254
        $region259: #{tpu_custom_call.1} parent=11 // loop_exit
          _
        %v533 = vld [vmem:[%s53] sm:$0xff]
        %v534 = vmul.f32 %v533, 5.656854
        %vm535 = vcmask 261120
        %536 = vst.msk [vmem:[%s53] sm:$0xff] %vm535, %v534
        %s537 = sand.u32 %s26, 1
        %s538 = scalar_lea.sflag [#allocation6], %s537
        %s539 = sand.u32 %s26, 1
        %s540 = smul.addr %s539, 8
        %s541 = scalar_lea.vmem [#allocation5], %s540
        // Predicated region
        $region294: #{tpu_custom_call.1} parent=11 // pred_check
          %p542 = pneg %p32
        $region295: #{tpu_custom_call.1} parent=11 // pred_check_branch
          %544 = sbr.rel (%p542) target = $region297
        $region296: #{tpu_custom_call.1} parent=11 // pred_region
          %s546 = ssub.s32 128, 128
          %547 = vsyncadd %s538, %s546
          %s548 = smul.addr %s17, 128
          %s549 = scalar_lea.hbm %s2, %s548
          %s551 = sshll.u32 %s541, 4
          %s552 = int_to_ptr.vmem [resolvable:$true] %s551
          %554 = dma.vmem_to_hbm [thread:$0]  %s552, 128, %s549, %s538
        $region297: #{tpu_custom_call.1} parent=11 // pred_fallthru
          _
      $region12: #{tpu_custom_call.1} parent=5 // pred_fallthru
        _
      %p555 = scmp.le.s32.totalorder 1, %s17
      // Predicated region
      $region298: #{tpu_custom_call.1} parent=5 // pred_check
        %p556 = pneg %p555
      $region299: #{tpu_custom_call.1} parent=5 // pred_check_branch
        %558 = sbr.rel (%p556) target = $region301
      $region300: #{tpu_custom_call.1} parent=5 // pred_region
        %s559 = ssub.s32 %s17, 1
        // Predicated region
        $region302: #{tpu_custom_call.1} parent=300 // pred_check
          %p560 = pneg %p38
        $region303: #{tpu_custom_call.1} parent=300 // pred_check_branch
          %562 = sbr.rel (%p560) target = $region305
        $region304: #{tpu_custom_call.1} parent=300 // pred_region
          %s563 = sand.u32 %s29, 1
          %s564 = scalar_lea.sflag [#allocation6], %s563
          %s565 = sand.u32 %s29, 1
          %s566 = smul.addr %s565, 8
          %s567 = scalar_lea.vmem [#allocation5], %s566
          %568 = dma.done %s564, 128
        $region305: #{tpu_custom_call.1} parent=300 // pred_fallthru
          _
      $region301: #{tpu_custom_call.1} parent=5 // pred_fallthru
        _
    $region6: #{tpu_custom_call.1} parent=1 // loop_footer
      %s21 = sadd.s32 1, %s17
    $region7: #{tpu_custom_call.1} parent=1 // loop_footer_branch
      %16 = sbr.rel target = $region3
    $region8: #{tpu_custom_call.1} parent=1 // loop_exit
      _
    %569 = vsyncpa [#allocation6], 1
    %s570 = scalar_lea.sflag [#allocation6], 1
    %571 = vsyncpa %s570, 1
  %572 = vsyncmov [#allocation2]
  %s573 = vpop.sfrf %572
  %p574 = scmp.eq.s32.totalorder %s573, 0
  %p575 = pneg %p574
  %577 = shalt.err (%p575)
  %s578 = scalar_lea.sflag [#allocation2], 1
  %579 = vsyncmov %s578
  %s580 = vpop.sfrf %579
  %p581 = scmp.eq.s32.totalorder %s580, 0
  %p582 = pneg %p581
  %584 = shalt.err (%p582)
  %s585 = scalar_lea.sflag [#allocation2], 2
  %586 = vsyncmov %s585
  %s587 = vpop.sfrf %586
  %p588 = scmp.eq.s32.totalorder %s587, 0
  %p589 = pneg %p588
  %591 = shalt.err (%p589)
  %s592 = scalar_lea.sflag [#allocation2], 3
  %593 = vsyncmov %s592
  %s594 = vpop.sfrf %593
  %p595 = scmp.eq.s32.totalorder %s594, 0
  %p596 = pneg %p595
  %598 = shalt.err (%p596)
  %s599 = scalar_lea.sflag [#allocation2], 4
  %600 = vsyncmov %s599
  %s601 = vpop.sfrf %600
  %p602 = scmp.eq.s32.totalorder %s601, 0
  %p603 = pneg %p602
  %605 = shalt.err (%p603)
  %s606 = scalar_lea.sflag [#allocation2], 5
  %607 = vsyncmov %s606
  %s608 = vpop.sfrf %607
  %p609 = scmp.eq.s32.totalorder %s608, 0
  %p610 = pneg %p609
  %612 = shalt.err (%p610)
  %s613 = scalar_lea.sflag [#allocation2], 6
  %614 = vsyncmov %s613
  %s615 = vpop.sfrf %614
  %p616 = scmp.eq.s32.totalorder %s615, 0
  %p617 = pneg %p616
  %619 = shalt.err (%p617)
  %s620 = scalar_lea.sflag [#allocation2], 7
  %621 = vsyncmov %s620
  %s622 = vpop.sfrf %621
  %p623 = scmp.eq.s32.totalorder %s622, 0
  %p624 = pneg %p623
  %626 = shalt.err (%p624)

</llo_original>
